<compile_context>
chip_gen: v7x
topology: tpu7x:2x2x1
jax: 0.10.0
libtpu: 0.0.40
codegen_flags: <defaults>
</compile_context>

<pallas_src>
from functools import partial

import jax
import jax.numpy as jnp
import numpy as np
from jax.experimental import pallas as pl
from jax.experimental.pallas import tpu as pltpu

EPS = 1e-5  # PyTorch BatchNorm1d default eps


def _make_repr_kernel(num_layers):
    """Fused MLP kernel for a static number of hidden layers.

    Refs:
      x_ref:   (B, P)                  f32  padded input activations
      w_ref:   (num_layers+1, P, P)    bf16 pre-transposed, zero-padded weights
      gb_ref:  (2*num_layers+1, P)     f32  rows = [g0, b0, g1, b1, ..., b_out]
      out_ref: (B, P)                  f32  padded output
    """

    def kernel(x_ref, w_ref, gb_ref, out_ref):
        h = x_ref[...]                                  # (B, P) f32
        inv_b = jnp.float32(1.0 / h.shape[0])

        for l in range(num_layers):
            # Linear (hidden bias dropped: cancelled exactly by training-mode BN).
            v = jnp.dot(h.astype(jnp.bfloat16), w_ref[l],
                        preferred_element_type=jnp.float32)

            # Training-mode BatchNorm1d (biased batch stats), scale/shift form + ReLU.
            # Two independent cross-sublane reductions (no mean->var serial chain).
            s1 = jnp.sum(v, axis=0, keepdims=True)
            s2 = jnp.sum(v * v, axis=0, keepdims=True)
            mean = s1 * inv_b
            var = s2 * inv_b - mean * mean              # f32; eps guards tiny negatives

            gamma = gb_ref[2 * l:2 * l + 1, :]          # (1, P)
            beta = gb_ref[2 * l + 1:2 * l + 2, :]       # (1, P)
            scale = gamma * jax.lax.rsqrt(var + EPS)    # rsqrt -> EUP slot
            shift = beta - scale * mean
            h = jnp.maximum(v * scale + shift, 0.0)

        # Final Linear (bias kept).  Single lane-dense (B, P) store.
        b_out = gb_ref[2 * num_layers:2 * num_layers + 1, :]
        out_ref[...] = (
            jnp.dot(h.astype(jnp.bfloat16), w_ref[num_layers],
                    preferred_element_type=jnp.float32)
            + b_out
        )

    return kernel


def preprocess_params(params):
    """One-time prep: pack all weights / BN params / output bias into two padded slabs."""
    w_hidden = params["w_hidden"]
    num_layers = len(w_hidden)
    num_channels = int(params["w_out"].shape[0])

    dims = [int(w.shape[0]) for w in w_hidden] + [int(w.shape[1]) for w in w_hidden]
    dims += [int(params["w_out"].shape[0]), int(params["w_out"].shape[1])]
    P = int(max(128, ((max(dims) + 127) // 128) * 128))  # common padded width (lanes)

    # Weight slab: (L+1, P, P), each slice is W_l^T (in, out) zero-padded.
    w_slab = np.zeros((num_layers + 1, P, P), np.float32)
    for l, w in enumerate(w_hidden):
        wt = np.asarray(w, np.float32).T                 # (in, out)
        w_slab[l, :wt.shape[0], :wt.shape[1]] = wt
    wo = np.asarray(params["w_out"], np.float32).T       # (H, C)
    w_slab[num_layers, :wo.shape[0], :wo.shape[1]] = wo

    # Gamma/beta/out-bias slab: (2L+1, P).  Padded columns get gamma=beta=0 so padded
    # features stay exactly zero through BN + ReLU.
    gb_slab = np.zeros((2 * num_layers + 1, P), np.float32)
    for l in range(num_layers):
        g = np.asarray(params["bn_gamma"][l], np.float32)
        b = np.asarray(params["bn_beta"][l], np.float32)
        gb_slab[2 * l, :g.shape[0]] = g
        gb_slab[2 * l + 1, :b.shape[0]] = b
    bo = np.asarray(params["b_out"], np.float32)
    gb_slab[2 * num_layers, :bo.shape[0]] = bo
    # NOTE: params["b_hidden"] intentionally NOT packed (cancelled by training-mode BN).

    return {
        "w_slab": jnp.asarray(w_slab, jnp.bfloat16),
        "gb_slab": jnp.asarray(gb_slab, jnp.float32),
        "num_layers": num_layers,
        "num_channels": num_channels,
        "pad": P,
    }


@partial(jax.jit, static_argnums=(3, 4, 5))
def _forward_jit(x, w_slab, gb_slab, num_layers, num_channels, pad):
    B, T, D = x.shape
    K = T * D
    xf = x.reshape(B, K).astype(jnp.float32)
    x_pad = jnp.zeros((B, pad), jnp.float32).at[:, :K].set(xf)

    cost = pl.CostEstimate(
        flops=2 * B * (num_layers + 1) * pad * pad,
        transcendentals=num_layers * pad,
        bytes_accessed=(B * pad * 4) + (w_slab.size * 2) + (gb_slab.size * 4)
        + (B * pad * 4),
    )

    vmem = pl.BlockSpec(memory_space=pltpu.MemorySpace.VMEM)
    out_pad = pl.pallas_call(
        _make_repr_kernel(num_layers),
        out_shape=jax.ShapeDtypeStruct((B, pad), jnp.float32),
        in_specs=[vmem, vmem, vmem],
        out_specs=vmem,
        cost_estimate=cost,
    )(x_pad, w_slab, gb_slab)
    return out_pad[:, :num_channels]


def representation_forward(x, prepped):
    """x: (B, T, D) float32; prepped = preprocess_params(params). Returns (B, C) f32."""
    return _forward_jit(x, prepped["w_slab"], prepped["gb_slab"],
                        prepped["num_layers"], prepped["num_channels"], prepped["pad"])


def representation_forward_ref(x, params):
    """Pure-JAX f32 reference mirroring the PyTorch module (training-mode BN, with biases)."""
    B, T, D = x.shape
    h = x.reshape(B, T * D)
    for w, b, g, bt in zip(params["w_hidden"], params["b_hidden"],
                           params["bn_gamma"], params["bn_beta"]):
        v = h @ w.T + b
        mean = jnp.mean(v, axis=0, keepdims=True)
        var = jnp.mean((v - mean) ** 2, axis=0, keepdims=True)
        v = g * (v - mean) * jax.lax.rsqrt(var + EPS) + bt
        h = jnp.maximum(v, 0.0)
    return h @ params["w_out"].T + params["b_out"]


def init_params(key, num_obs_channels, num_layers, num_hidden, num_channels):
    """PyTorch-default-style init: uniform(-1/sqrt(fan_in), 1/sqrt(fan_in))."""
    keys = jax.random.split(key, 2 * (num_layers + 1))

    def unif(k, shape, fan_in):
        bound = 1.0 / np.sqrt(fan_in)
        return jax.random.uniform(k, shape, jnp.float32, -bound, bound)

    w_hidden, b_hidden, bn_gamma, bn_beta = [], [], [], []
    in_f = num_obs_channels
    for l in range(num_layers):
        w_hidden.append(unif(keys[2 * l], (num_hidden, in_f), in_f))
        b_hidden.append(unif(keys[2 * l + 1], (num_hidden,), in_f))
        bn_gamma.append(jnp.ones((num_hidden,), jnp.float32))
        bn_beta.append(jnp.zeros((num_hidden,), jnp.float32))
        in_f = num_hidden
    w_out = unif(keys[2 * num_layers], (num_channels, num_hidden), num_hidden)
    b_out = unif(keys[2 * num_layers + 1], (num_channels,), num_hidden)
    return {
        "w_hidden": w_hidden, "b_hidden": b_hidden,
        "bn_gamma": bn_gamma, "bn_beta": bn_beta,
        "w_out": w_out, "b_out": b_out,
    }


if __name__ == "__main__":
    # Small shapes consistent with the module: obs (B, T, D) flattened to T*D features.
    B, T, D = 8, 4, 8
    num_obs_channels = T * D   # 32 == Linear in_features
    num_layers = 2
    num_hidden = 128           # lane-dense hidden width
    num_channels = 32

    key = jax.random.PRNGKey(0)
    kx, kp = jax.random.split(key)
    x = jax.random.normal(kx, (B, T, D), jnp.float32)
    params = init_params(kp, num_obs_channels, num_layers, num_hidden, num_channels)

    # One-time weight prep (hoisted out of the per-call path), then jitted forward.
    prepped = preprocess_params(params)
    out = representation_forward(x, prepped)
    jax.block_until_ready(out)

    # Correctness check against the pure-f32 reference.  Tolerance accounts for bf16 MXU
    # operands (f32 accumulation) inside the kernel.
    out_ref = representation_forward_ref(x, params)
    np.testing.assert_allclose(np.asarray(out), np.asarray(out_ref), rtol=3e-2, atol=3e-2)

    print("KERNEL_OK")
</pallas_src>

<mosaic_0001>
module attributes {stable_mosaic.version = 11 : i64} {
  func.func @kernel(%arg0: memref<8x128xf32, #tpu.memory_space<vmem>>, %arg1: memref<3x128x128xbf16, #tpu.memory_space<vmem>>, %arg2: memref<5x128xf32, #tpu.memory_space<vmem>>, %arg3: memref<8x128xf32, #tpu.memory_space<vmem>>) attributes {dimension_semantics = [], scalar_prefetch = 0 : i64, scratch_operands = 0 : i64, tpu.core_type = #tpu.core_type<tc>} {
    %c0 = arith.constant 0 : index
    %c0_0 = arith.constant 0 : index
    %0 = vector.load %arg0[%c0, %c0_0] : memref<8x128xf32, #tpu.memory_space<vmem>>, vector<8x128xf32>
    %1 = arith.truncf %0 : vector<8x128xf32> to vector<8x128xbf16>
    %c0_1 = arith.constant 0 : index
    %c0_2 = arith.constant 0 : index
    %c0_3 = arith.constant 0 : index
    %2 = vector.load %arg1[%c0_1, %c0_2, %c0_3] : memref<3x128x128xbf16, #tpu.memory_space<vmem>>, vector<1x128x128xbf16>
    %3 = vector.shape_cast %2 : vector<1x128x128xbf16> to vector<128x128xbf16>
    %cst = arith.constant dense<0.000000e+00> : vector<8x128xf32>
    %4 = tpu.matmul %1, %3, %cst {dimension_numbers = #tpu.dot_dimension_numbers<[1], [0], [0], [1], [0, 0, 1, 1], [], []>} : vector<8x128xbf16>, vector<128x128xbf16>, vector<8x128xf32> -> vector<8x128xf32>
    %cst_4 = arith.constant dense<0.000000e+00> : vector<128xf32>
    %5 = vector.multi_reduction <add>, %4, %cst_4 [0] : vector<8x128xf32> to vector<128xf32>
    %6 = vector.shape_cast %5 : vector<128xf32> to vector<1x128xf32>
    %7 = arith.mulf %4, %4 : vector<8x128xf32>
    %cst_5 = arith.constant dense<0.000000e+00> : vector<128xf32>
    %8 = vector.multi_reduction <add>, %7, %cst_5 [0] : vector<8x128xf32> to vector<128xf32>
    %9 = vector.shape_cast %8 : vector<128xf32> to vector<1x128xf32>
    %cst_6 = arith.constant 1.250000e-01 : f32
    %10 = vector.broadcast %cst_6 : f32 to vector<1x128xf32>
    %11 = arith.mulf %6, %10 : vector<1x128xf32>
    %cst_7 = arith.constant 1.250000e-01 : f32
    %12 = vector.broadcast %cst_7 : f32 to vector<1x128xf32>
    %13 = arith.mulf %9, %12 : vector<1x128xf32>
    %14 = arith.mulf %11, %11 : vector<1x128xf32>
    %15 = arith.subf %13, %14 : vector<1x128xf32>
    %c0_8 = arith.constant 0 : index
    %c0_9 = arith.constant 0 : index
    %16 = vector.load %arg2[%c0_8, %c0_9] : memref<5x128xf32, #tpu.memory_space<vmem>>, vector<1x128xf32>
    %c1 = arith.constant 1 : index
    %c0_10 = arith.constant 0 : index
    %17 = vector.load %arg2[%c1, %c0_10] : memref<5x128xf32, #tpu.memory_space<vmem>>, vector<1x128xf32>
    %cst_11 = arith.constant 9.99999974E-6 : f32
    %18 = vector.broadcast %cst_11 : f32 to vector<1x128xf32>
    %19 = arith.addf %15, %18 : vector<1x128xf32>
    %20 = math.rsqrt %19 : vector<1x128xf32>
    %21 = arith.mulf %16, %20 : vector<1x128xf32>
    %22 = arith.mulf %21, %11 : vector<1x128xf32>
    %23 = arith.subf %17, %22 : vector<1x128xf32>
    %24 = vector.broadcast %21 : vector<1x128xf32> to vector<8x128xf32>
    %25 = arith.mulf %4, %24 : vector<8x128xf32>
    %26 = vector.broadcast %23 : vector<1x128xf32> to vector<8x128xf32>
    %27 = arith.addf %25, %26 : vector<8x128xf32>
    %cst_12 = arith.constant 0.000000e+00 : f32
    %28 = vector.broadcast %cst_12 : f32 to vector<8x128xf32>
    %29 = arith.maximumf %27, %28 : vector<8x128xf32>
    %30 = arith.truncf %29 : vector<8x128xf32> to vector<8x128xbf16>
    %c1_13 = arith.constant 1 : index
    %c0_14 = arith.constant 0 : index
    %c0_15 = arith.constant 0 : index
    %31 = vector.load %arg1[%c1_13, %c0_14, %c0_15] : memref<3x128x128xbf16, #tpu.memory_space<vmem>>, vector<1x128x128xbf16>
    %32 = vector.shape_cast %31 : vector<1x128x128xbf16> to vector<128x128xbf16>
    %cst_16 = arith.constant dense<0.000000e+00> : vector<8x128xf32>
    %33 = tpu.matmul %30, %32, %cst_16 {dimension_numbers = #tpu.dot_dimension_numbers<[1], [0], [0], [1], [0, 0, 1, 1], [], []>} : vector<8x128xbf16>, vector<128x128xbf16>, vector<8x128xf32> -> vector<8x128xf32>
    %cst_17 = arith.constant dense<0.000000e+00> : vector<128xf32>
    %34 = vector.multi_reduction <add>, %33, %cst_17 [0] : vector<8x128xf32> to vector<128xf32>
    %35 = vector.shape_cast %34 : vector<128xf32> to vector<1x128xf32>
    %36 = arith.mulf %33, %33 : vector<8x128xf32>
    %cst_18 = arith.constant dense<0.000000e+00> : vector<128xf32>
    %37 = vector.multi_reduction <add>, %36, %cst_18 [0] : vector<8x128xf32> to vector<128xf32>
    %38 = vector.shape_cast %37 : vector<128xf32> to vector<1x128xf32>
    %cst_19 = arith.constant 1.250000e-01 : f32
    %39 = vector.broadcast %cst_19 : f32 to vector<1x128xf32>
    %40 = arith.mulf %35, %39 : vector<1x128xf32>
    %cst_20 = arith.constant 1.250000e-01 : f32
    %41 = vector.broadcast %cst_20 : f32 to vector<1x128xf32>
    %42 = arith.mulf %38, %41 : vector<1x128xf32>
    %43 = arith.mulf %40, %40 : vector<1x128xf32>
    %44 = arith.subf %42, %43 : vector<1x128xf32>
    %c2 = arith.constant 2 : index
    %c0_21 = arith.constant 0 : index
    %45 = vector.load %arg2[%c2, %c0_21] : memref<5x128xf32, #tpu.memory_space<vmem>>, vector<1x128xf32>
    %c3 = arith.constant 3 : index
    %c0_22 = arith.constant 0 : index
    %46 = vector.load %arg2[%c3, %c0_22] : memref<5x128xf32, #tpu.memory_space<vmem>>, vector<1x128xf32>
    %cst_23 = arith.constant 9.99999974E-6 : f32
    %47 = vector.broadcast %cst_23 : f32 to vector<1x128xf32>
    %48 = arith.addf %44, %47 : vector<1x128xf32>
    %49 = math.rsqrt %48 : vector<1x128xf32>
    %50 = arith.mulf %45, %49 : vector<1x128xf32>
    %51 = arith.mulf %50, %40 : vector<1x128xf32>
    %52 = arith.subf %46, %51 : vector<1x128xf32>
    %53 = vector.broadcast %50 : vector<1x128xf32> to vector<8x128xf32>
    %54 = arith.mulf %33, %53 : vector<8x128xf32>
    %55 = vector.broadcast %52 : vector<1x128xf32> to vector<8x128xf32>
    %56 = arith.addf %54, %55 : vector<8x128xf32>
    %cst_24 = arith.constant 0.000000e+00 : f32
    %57 = vector.broadcast %cst_24 : f32 to vector<8x128xf32>
    %58 = arith.maximumf %56, %57 : vector<8x128xf32>
    %c4 = arith.constant 4 : index
    %c0_25 = arith.constant 0 : index
    %59 = vector.load %arg2[%c4, %c0_25] : memref<5x128xf32, #tpu.memory_space<vmem>>, vector<1x128xf32>
    %60 = arith.truncf %58 : vector<8x128xf32> to vector<8x128xbf16>
    %c2_26 = arith.constant 2 : index
    %c0_27 = arith.constant 0 : index
    %c0_28 = arith.constant 0 : index
    %61 = vector.load %arg1[%c2_26, %c0_27, %c0_28] : memref<3x128x128xbf16, #tpu.memory_space<vmem>>, vector<1x128x128xbf16>
    %62 = vector.shape_cast %61 : vector<1x128x128xbf16> to vector<128x128xbf16>
    %cst_29 = arith.constant dense<0.000000e+00> : vector<8x128xf32>
    %63 = tpu.matmul %60, %62, %cst_29 {dimension_numbers = #tpu.dot_dimension_numbers<[1], [0], [0], [1], [0, 0, 1, 1], [], []>} : vector<8x128xbf16>, vector<128x128xbf16>, vector<8x128xf32> -> vector<8x128xf32>
    %64 = vector.broadcast %59 : vector<1x128xf32> to vector<8x128xf32>
    %65 = arith.addf %63, %64 : vector<8x128xf32>
    %c0_30 = arith.constant 0 : index
    %c0_31 = arith.constant 0 : index
    %66 = vector.load %arg3[%c0_30, %c0_31] : memref<8x128xf32, #tpu.memory_space<vmem>>, vector<8x128xf32>
    tpu.vector_store %arg3[%c0_30, %c0_31], %65 {strides = array<i32>} : memref<8x128xf32, #tpu.memory_space<vmem>>, vector<8x128xf32>,
    return
  }
}

</mosaic_0001>

<llo_original>
// kernel: _forward_jit.1
$region0: #{_forward_jit.1}
  #allocation0 [shape = 'u32[]', space=smem, size = 0x4, offset = 0x4, fixed_abs, tag = 'smem constant byte address 0x4 - core index']
  #allocation1 [shape = 'u32[144,128]{1,0:T(1,128)}', space=vmem, size = 0x12000, scoped, tag = 'internal scratch']
  %s0 = inlined_call_operand.vmem [shape: f32[8,128], index: 0, kind: input, shape index: {}]
  %s1 = inlined_call_operand.hbm [shape: bf16[3,128,128], index: 1, kind: input, shape index: {}]
  %s2 = inlined_call_operand.vmem [shape: f32[5,128], index: 2, kind: input, shape index: {}]
  %s3 = inlined_call_operand.hbm [shape: f32[8,128], index: 3, kind: output, shape index: {}]
  %s4 = sld [smem:[#allocation0]]
  $region26: #{_forward_jit.1} parent=0
    _
  %s6 = ssub.s32 1, %s4
  %s7 = scalar_select 0, %s6, %s4
  $region1: #{_forward_jit.1} parent=0
    #allocation2 [shape = 'u8[98304]{0}', space=vmem, size = 0x18000, scoped, tag = 'input window, operand 1, single buffered']
    #allocation3 [shape = 's32[1]{0}', space=sflag, size = 0x4, scoped, tag = 'scoped memory for _forward_jit.1']
    #allocation4 [shape = 's32[1]{0}', space=sflag, size = 0x4, scoped, tag = 'scoped memory for _forward_jit.1']
    #allocation5 [shape = 'u8[4096]{0}', space=vmem, size = 0x1000, scoped, tag = 'output window, operand 0, single buffered']
    %8 = vsyncpa [#allocation3], 0
    %9 = vsyncpa [#allocation4], 0
    // Predicated region
    $region2: #{_forward_jit.1} parent=1 // pred_check
      _
    $region3: #{_forward_jit.1} parent=1 // pred_check_branch
      %11 = sbr.rel (0) target = $region5
    $region4: #{_forward_jit.1} parent=1 // pred_region
      _
    $region5: #{_forward_jit.1} parent=1 // pred_fallthru
      _
    // Predicated region
    $region6: #{_forward_jit.1} parent=1 // pred_check
      _
    $region7: #{_forward_jit.1} parent=1 // pred_check_branch
      %13 = sbr.rel (0) target = $region9
    $region8: #{_forward_jit.1} parent=1 // pred_region
      %s15 = ssub.s32 3072, 3072
      %16 = vsyncadd [#allocation3], %s15
      %s17 = sshll.u32 [#allocation2], 4
      %s18 = int_to_ptr.vmem [resolvable:$true] %s17
      %23 = dma.hbm_to_vmem [thread:$0]  %s1, 3072, %s18, [#allocation3], 64, 64, 4
    $region9: #{_forward_jit.1} parent=1 // pred_fallthru
      _
    // Predicated region
    $region10: #{_forward_jit.1} parent=1 // pred_check
      _
    $region11: #{_forward_jit.1} parent=1 // pred_check_branch
      %25 = sbr.rel (0) target = $region13
    $region12: #{_forward_jit.1} parent=1 // pred_region
      _
    $region13: #{_forward_jit.1} parent=1 // pred_fallthru
      _
    // Predicated region
    $region14: #{_forward_jit.1} parent=1 // pred_check
      _
    $region15: #{_forward_jit.1} parent=1 // pred_check_branch
      %27 = sbr.rel (0) target = $region17
    $region16: #{_forward_jit.1} parent=1 // pred_region
      %28 = dma.done [#allocation3], 3072
    $region17: #{_forward_jit.1} parent=1 // pred_fallthru
      _
    %v30 = vld [vmem:[%s0] sm:$0xff]
    %v31 = vpack.c.bf16 %v30, %v30
    %v32 = vld [vmem:[#allocation2] sm:$0xf]
    %v33 = vld [vmem:[#allocation2 + $0x4] sm:$0xf]
    %v34 = vld [vmem:[#allocation2 + $0x8] sm:$0xf]
    %v35 = vld [vmem:[#allocation2 + $0xc] sm:$0xf]
    %v36 = vld [vmem:[#allocation2 + $0x10] sm:$0xf]
    %v37 = vld [vmem:[#allocation2 + $0x14] sm:$0xf]
    %v38 = vld [vmem:[#allocation2 + $0x18] sm:$0xf]
    %v39 = vld [vmem:[#allocation2 + $0x1c] sm:$0xf]
    %v40 = vld [vmem:[#allocation2 + $0x20] sm:$0xf]
    %v41 = vld [vmem:[#allocation2 + $0x24] sm:$0xf]
    %v42 = vld [vmem:[#allocation2 + $0x28] sm:$0xf]
    %v43 = vld [vmem:[#allocation2 + $0x2c] sm:$0xf]
    %v44 = vld [vmem:[#allocation2 + $0x30] sm:$0xf]
    %v45 = vld [vmem:[#allocation2 + $0x34] sm:$0xf]
    %v46 = vld [vmem:[#allocation2 + $0x38] sm:$0xf]
    %v47 = vld [vmem:[#allocation2 + $0x3c] sm:$0xf]
    %v64 = vunpack.c.l.b16 %v32
    %v65 = vunpack.c.l.b16 %v33
    %v66 = vunpack.c.l.b16 %v34
    %v67 = vunpack.c.l.b16 %v35
    %v68 = vunpack.c.l.b16 %v36
    %v69 = vunpack.c.l.b16 %v37
    %v70 = vunpack.c.l.b16 %v38
    %v71 = vunpack.c.l.b16 %v39
    %v72 = vunpack.c.l.b16 %v40
    %v73 = vunpack.c.l.b16 %v41
    %v74 = vunpack.c.l.b16 %v42
    %v75 = vunpack.c.l.b16 %v43
    %v76 = vunpack.c.l.b16 %v44
    %v77 = vunpack.c.l.b16 %v45
    %v78 = vunpack.c.l.b16 %v46
    %v79 = vunpack.c.l.b16 %v47
    %v80 = vpack.c.b16 %v65, %v64
    %v81 = vpack.c.b16 %v67, %v66
    %v82 = vpack.c.b16 %v69, %v68
    %v83 = vpack.c.b16 %v71, %v70
    %v84 = vpack.c.b16 %v73, %v72
    %v85 = vpack.c.b16 %v75, %v74
    %v86 = vpack.c.b16 %v77, %v76
    %v87 = vpack.c.b16 %v79, %v78
    %96 = vmatprep.subr.bf16.mxu0 0
    %97 = vmatpush1.bf16.msra.mxu0 %v80
    %98 = vmatprep.subr.bf16.mxu0 0
    %99 = vmatpush1.bf16.msra.mxu0 %v81
    %100 = vmatprep.subr.bf16.mxu0 0
    %101 = vmatpush1.bf16.msra.mxu0 %v82
    %102 = vmatprep.subr.bf16.mxu0 0
    %103 = vmatpush1.bf16.msra.mxu0 %v83
    %104 = vmatprep.subr.bf16.mxu0 0
    %105 = vmatpush1.bf16.msra.mxu0 %v84
    %106 = vmatprep.subr.bf16.mxu0 0
    %107 = vmatpush1.bf16.msra.mxu0 %v85
    %108 = vmatprep.subr.bf16.mxu0 0
    %109 = vmatpush1.bf16.msra.mxu0 %v86
    %110 = vmatprep.subr.bf16.mxu0 0
    %111 = vmatpush1.bf16.msra.mxu0 %v87
    %112 = vmatprep.subr.bf16.mxu0 0
    %113 = vmatpush1.bf16.msra.mxu0 0
    %114 = vmatprep.subr.bf16.mxu0 0
    %115 = vmatpush1.bf16.msra.mxu0 0
    %116 = vmatprep.subr.bf16.mxu0 0
    %117 = vmatpush1.bf16.msra.mxu0 0
    %118 = vmatprep.subr.bf16.mxu0 0
    %119 = vmatpush1.bf16.msra.mxu0 0
    %120 = vmatprep.subr.bf16.mxu0 0
    %121 = vmatpush1.bf16.msra.mxu0 0
    %122 = vmatprep.subr.bf16.mxu0 0
    %123 = vmatpush1.bf16.msra.mxu0 0
    %124 = vmatprep.subr.bf16.mxu0 0
    %125 = vmatpush1.bf16.msra.mxu0 0
    %126 = vmatprep.subr.bf16.mxu0 0
    %127 = vmatpush1.bf16.msra.mxu0 0
    %128 = vmatprep.mubr.bf16.mxu0 0
    %129 = vmatmul.mubr.bf16.gmra.mrb[0].mxu0 %v31
    %v130 = vpop.f32.mrb[0].mxu0
    %v131 = vadd.f32 0.0, %v130
    %v132 = vpop.f32.mrb[0].mxu0
    %v133 = vpop.f32.mrb[0].mxu0
    %v134 = vpop.f32.mrb[0].mxu0
    %135 = vdwg.mxu0
    %v136 = vrot.slane %v131, 4
    %v137 = vadd.f32 %v131, %v136
    %v138 = vrot.slane %v137, 2
    %v139 = vadd.f32 %v137, %v138
    %v140 = vrot.slane %v139, 1
    %v141 = vadd.f32 %v139, %v140
    %v142 = vmul.f32 %v131, %v131
    %v143 = vrot.slane %v142, 4
    %v144 = vadd.f32 %v142, %v143
    %v145 = vrot.slane %v144, 2
    %v146 = vadd.f32 %v144, %v145
    %v147 = vrot.slane %v146, 1
    %v148 = vadd.f32 %v146, %v147
    %v149 = vmul.f32 %v141, 0.125
    %v150 = vmul.f32 %v148, 0.125
    %v151 = vmul.f32 %v149, %v149
    %v152 = vsub.f32 %v150, %v151
    %v153 = vld [vmem:[%s2] sm:$0x1]
    %v154 = vld [vmem:[%s2 + $0x1] sm:$0x1]
    %v155 = vadd.f32 %v152, 1e-05
    %v156 = vrsqrt.pop %v155
    %v157 = vmul.f32 %v153, %v156
    %v158 = vmul.f32 %v157, %v149
    %v159 = vsub.f32 %v154, %v158
    %v160 = vlaneseq
    %v161 = vshrl.u32 %v160, 7
    %v162 = vsub.s32 0, %v161
    %v163 = vrot.slane %v157, %v162
    %v164 = vmul.f32 %v131, %v163
    %v165 = vlaneseq
    %v166 = vshrl.u32 %v165, 7
    %v167 = vsub.s32 0, %v166
    %v168 = vrot.slane %v159, %v167
    %v169 = vadd.f32 %v164, %v168
    %v170 = vmax.f32 %v169, 0.0
    %v171 = vpack.c.bf16 %v170, %v170
    %s172 = scalar_lea.vmem [#allocation2], 64
    %v173 = vld [vmem:[%s172] sm:$0xf]
    %v174 = vld [vmem:[%s172 + $0x4] sm:$0xf]
    %v175 = vld [vmem:[%s172 + $0x8] sm:$0xf]
    %v176 = vld [vmem:[%s172 + $0xc] sm:$0xf]
    %v177 = vld [vmem:[%s172 + $0x10] sm:$0xf]
    %v178 = vld [vmem:[%s172 + $0x14] sm:$0xf]
    %v179 = vld [vmem:[%s172 + $0x18] sm:$0xf]
    %v180 = vld [vmem:[%s172 + $0x1c] sm:$0xf]
    %v181 = vld [vmem:[%s172 + $0x20] sm:$0xf]
    %v182 = vld [vmem:[%s172 + $0x24] sm:$0xf]
    %v183 = vld [vmem:[%s172 + $0x28] sm:$0xf]
    %v184 = vld [vmem:[%s172 + $0x2c] sm:$0xf]
    %v185 = vld [vmem:[%s172 + $0x30] sm:$0xf]
    %v186 = vld [vmem:[%s172 + $0x34] sm:$0xf]
    %v187 = vld [vmem:[%s172 + $0x38] sm:$0xf]
    %v188 = vld [vmem:[%s172 + $0x3c] sm:$0xf]
    %v205 = vunpack.c.l.b16 %v173
    %v206 = vunpack.c.l.b16 %v174
    %v207 = vunpack.c.l.b16 %v175
    %v208 = vunpack.c.l.b16 %v176
    %v209 = vunpack.c.l.b16 %v177
    %v210 = vunpack.c.l.b16 %v178
    %v211 = vunpack.c.l.b16 %v179
    %v212 = vunpack.c.l.b16 %v180
    %v213 = vunpack.c.l.b16 %v181
    %v214 = vunpack.c.l.b16 %v182
    %v215 = vunpack.c.l.b16 %v183
    %v216 = vunpack.c.l.b16 %v184
    %v217 = vunpack.c.l.b16 %v185
    %v218 = vunpack.c.l.b16 %v186
    %v219 = vunpack.c.l.b16 %v187
    %v220 = vunpack.c.l.b16 %v188
    %v221 = vpack.c.b16 %v206, %v205
    %v222 = vpack.c.b16 %v208, %v207
    %v223 = vpack.c.b16 %v210, %v209
    %v224 = vpack.c.b16 %v212, %v211
    %v225 = vpack.c.b16 %v214, %v213
    %v226 = vpack.c.b16 %v216, %v215
    %v227 = vpack.c.b16 %v218, %v217
    %v228 = vpack.c.b16 %v220, %v219
    %237 = vmatprep.subr.bf16.mxu0 0
    %238 = vmatpush1.bf16.msra.mxu0 %v221
    %239 = vmatprep.subr.bf16.mxu0 0
    %240 = vmatpush1.bf16.msra.mxu0 %v222
    %241 = vmatprep.subr.bf16.mxu0 0
    %242 = vmatpush1.bf16.msra.mxu0 %v223
    %243 = vmatprep.subr.bf16.mxu0 0
    %244 = vmatpush1.bf16.msra.mxu0 %v224
    %245 = vmatprep.subr.bf16.mxu0 0
    %246 = vmatpush1.bf16.msra.mxu0 %v225
    %247 = vmatprep.subr.bf16.mxu0 0
    %248 = vmatpush1.bf16.msra.mxu0 %v226
    %249 = vmatprep.subr.bf16.mxu0 0
    %250 = vmatpush1.bf16.msra.mxu0 %v227
    %251 = vmatprep.subr.bf16.mxu0 0
    %252 = vmatpush1.bf16.msra.mxu0 %v228
    %253 = vmatprep.subr.bf16.mxu0 0
    %254 = vmatpush1.bf16.msra.mxu0 0
    %255 = vmatprep.subr.bf16.mxu0 0
    %256 = vmatpush1.bf16.msra.mxu0 0
    %257 = vmatprep.subr.bf16.mxu0 0
    %258 = vmatpush1.bf16.msra.mxu0 0
    %259 = vmatprep.subr.bf16.mxu0 0
    %260 = vmatpush1.bf16.msra.mxu0 0
    %261 = vmatprep.subr.bf16.mxu0 0
    %262 = vmatpush1.bf16.msra.mxu0 0
    %263 = vmatprep.subr.bf16.mxu0 0
    %264 = vmatpush1.bf16.msra.mxu0 0
    %265 = vmatprep.subr.bf16.mxu0 0
    %266 = vmatpush1.bf16.msra.mxu0 0
    %267 = vmatprep.subr.bf16.mxu0 0
    %268 = vmatpush1.bf16.msra.mxu0 0
    %269 = vmatprep.mubr.bf16.mxu0 0
    %270 = vmatmul.mubr.bf16.gmra.mrb[0].mxu0 %v171
    %v271 = vpop.f32.mrb[0].mxu0
    %v272 = vadd.f32 0.0, %v271
    %v273 = vpop.f32.mrb[0].mxu0
    %v274 = vpop.f32.mrb[0].mxu0
    %v275 = vpop.f32.mrb[0].mxu0
    %276 = vdwg.mxu0
    %v277 = vrot.slane %v272, 4
    %v278 = vadd.f32 %v272, %v277
    %v279 = vrot.slane %v278, 2
    %v280 = vadd.f32 %v278, %v279
    %v281 = vrot.slane %v280, 1
    %v282 = vadd.f32 %v280, %v281
    %v283 = vmul.f32 %v272, %v272
    %v284 = vrot.slane %v283, 4
    %v285 = vadd.f32 %v283, %v284
    %v286 = vrot.slane %v285, 2
    %v287 = vadd.f32 %v285, %v286
    %v288 = vrot.slane %v287, 1
    %v289 = vadd.f32 %v287, %v288
    %v290 = vmul.f32 %v282, 0.125
    %v291 = vmul.f32 %v289, 0.125
    %v292 = vmul.f32 %v290, %v290
    %v293 = vsub.f32 %v291, %v292
    %v294 = vld [vmem:[%s2 + $0x2] sm:$0x1]
    %v295 = vld [vmem:[%s2 + $0x3] sm:$0x1]
    %v296 = vadd.f32 %v293, 1e-05
    %v297 = vrsqrt.pop %v296
    %v298 = vmul.f32 %v294, %v297
    %v299 = vmul.f32 %v298, %v290
    %v300 = vsub.f32 %v295, %v299
    %v301 = vlaneseq
    %v302 = vshrl.u32 %v301, 7
    %v303 = vsub.s32 0, %v302
    %v304 = vrot.slane %v298, %v303
    %v305 = vmul.f32 %v272, %v304
    %v306 = vlaneseq
    %v307 = vshrl.u32 %v306, 7
    %v308 = vsub.s32 0, %v307
    %v309 = vrot.slane %v300, %v308
    %v310 = vadd.f32 %v305, %v309
    %v311 = vmax.f32 %v310, 0.0
    %v312 = vld [vmem:[%s2 + $0x4] sm:$0x1]
    %v313 = vpack.c.bf16 %v311, %v311
    %s314 = scalar_lea.vmem [#allocation2], 128
    %v315 = vld [vmem:[%s314] sm:$0xf]
    %v316 = vld [vmem:[%s314 + $0x4] sm:$0xf]
    %v317 = vld [vmem:[%s314 + $0x8] sm:$0xf]
    %v318 = vld [vmem:[%s314 + $0xc] sm:$0xf]
    %v319 = vld [vmem:[%s314 + $0x10] sm:$0xf]
    %v320 = vld [vmem:[%s314 + $0x14] sm:$0xf]
    %v321 = vld [vmem:[%s314 + $0x18] sm:$0xf]
    %v322 = vld [vmem:[%s314 + $0x1c] sm:$0xf]
    %v323 = vld [vmem:[%s314 + $0x20] sm:$0xf]
    %v324 = vld [vmem:[%s314 + $0x24] sm:$0xf]
    %v325 = vld [vmem:[%s314 + $0x28] sm:$0xf]
    %v326 = vld [vmem:[%s314 + $0x2c] sm:$0xf]
    %v327 = vld [vmem:[%s314 + $0x30] sm:$0xf]
    %v328 = vld [vmem:[%s314 + $0x34] sm:$0xf]
    %v329 = vld [vmem:[%s314 + $0x38] sm:$0xf]
    %v330 = vld [vmem:[%s314 + $0x3c] sm:$0xf]
    %v331 = vlaneseq
    %v332 = vshrl.u32 %v331, 7
    %v333 = vsub.s32 0, %v332
    %v334 = vrot.slane %v312, %v333
    %v351 = vunpack.c.l.b16 %v315
    %v352 = vunpack.c.l.b16 %v316
    %v353 = vunpack.c.l.b16 %v317
    %v354 = vunpack.c.l.b16 %v318
    %v355 = vunpack.c.l.b16 %v319
    %v356 = vunpack.c.l.b16 %v320
    %v357 = vunpack.c.l.b16 %v321
    %v358 = vunpack.c.l.b16 %v322
    %v359 = vunpack.c.l.b16 %v323
    %v360 = vunpack.c.l.b16 %v324
    %v361 = vunpack.c.l.b16 %v325
    %v362 = vunpack.c.l.b16 %v326
    %v363 = vunpack.c.l.b16 %v327
    %v364 = vunpack.c.l.b16 %v328
    %v365 = vunpack.c.l.b16 %v329
    %v366 = vunpack.c.l.b16 %v330
    %v367 = vpack.c.b16 %v352, %v351
    %v368 = vpack.c.b16 %v354, %v353
    %v369 = vpack.c.b16 %v356, %v355
    %v370 = vpack.c.b16 %v358, %v357
    %v371 = vpack.c.b16 %v360, %v359
    %v372 = vpack.c.b16 %v362, %v361
    %v373 = vpack.c.b16 %v364, %v363
    %v374 = vpack.c.b16 %v366, %v365
    %383 = vmatprep.subr.bf16.mxu0 0
    %384 = vmatpush1.bf16.msra.mxu0 %v367
    %385 = vmatprep.subr.bf16.mxu0 0
    %386 = vmatpush1.bf16.msra.mxu0 %v368
    %387 = vmatprep.subr.bf16.mxu0 0
    %388 = vmatpush1.bf16.msra.mxu0 %v369
    %389 = vmatprep.subr.bf16.mxu0 0
    %390 = vmatpush1.bf16.msra.mxu0 %v370
    %391 = vmatprep.subr.bf16.mxu0 0
    %392 = vmatpush1.bf16.msra.mxu0 %v371
    %393 = vmatprep.subr.bf16.mxu0 0
    %394 = vmatpush1.bf16.msra.mxu0 %v372
    %395 = vmatprep.subr.bf16.mxu0 0
    %396 = vmatpush1.bf16.msra.mxu0 %v373
    %397 = vmatprep.subr.bf16.mxu0 0
    %398 = vmatpush1.bf16.msra.mxu0 %v374
    %399 = vmatprep.subr.bf16.mxu0 0
    %400 = vmatpush1.bf16.msra.mxu0 0
    %401 = vmatprep.subr.bf16.mxu0 0
    %402 = vmatpush1.bf16.msra.mxu0 0
    %403 = vmatprep.subr.bf16.mxu0 0
    %404 = vmatpush1.bf16.msra.mxu0 0
    %405 = vmatprep.subr.bf16.mxu0 0
    %406 = vmatpush1.bf16.msra.mxu0 0
    %407 = vmatprep.subr.bf16.mxu0 0
    %408 = vmatpush1.bf16.msra.mxu0 0
    %409 = vmatprep.subr.bf16.mxu0 0
    %410 = vmatpush1.bf16.msra.mxu0 0
    %411 = vmatprep.subr.bf16.mxu0 0
    %412 = vmatpush1.bf16.msra.mxu0 0
    %413 = vmatprep.subr.bf16.mxu0 0
    %414 = vmatpush1.bf16.msra.mxu0 0
    %415 = vmatprep.mubr.bf16.mxu0 0
    %416 = vmatmul.mubr.bf16.gmra.mrb[0].mxu0 %v313
    %v417 = vpop.f32.mrb[0].mxu0
    %v418 = vadd.f32 %v334, %v417
    %v419 = vpop.f32.mrb[0].mxu0
    %v420 = vpop.f32.mrb[0].mxu0
    %v421 = vpop.f32.mrb[0].mxu0
    %422 = vdwg.mxu0
    %423 = vst [vmem:[#allocation5] sm:$0xff] %v418
    // Predicated region
    $region18: #{_forward_jit.1} parent=1 // pred_check
      _
    $region19: #{_forward_jit.1} parent=1 // pred_check_branch
      %425 = sbr.rel (0) target = $region21
    $region20: #{_forward_jit.1} parent=1 // pred_region
      %s427 = ssub.s32 128, 128
      %428 = vsyncadd [#allocation4], %s427
      %s430 = sshll.u32 [#allocation5], 4
      %s431 = int_to_ptr.vmem [resolvable:$true] %s430
      %433 = dma.vmem_to_hbm [thread:$0]  %s431, 128, %s3, [#allocation4]
    $region21: #{_forward_jit.1} parent=1 // pred_fallthru
      _
    // Predicated region
    $region22: #{_forward_jit.1} parent=1 // pred_check
      _
    $region23: #{_forward_jit.1} parent=1 // pred_check_branch
      %435 = sbr.rel (0) target = $region25
    $region24: #{_forward_jit.1} parent=1 // pred_region
      %436 = dma.done [#allocation4], 128
    $region25: #{_forward_jit.1} parent=1 // pred_fallthru
      _
    %437 = vsyncpa [#allocation3], 1
    %438 = vsyncpa [#allocation4], 1

</llo_original>
